<compile_context>
chip_gen: v5e
topology: v5e:2x2
jax: 0.10.0
libtpu: 0.0.40
codegen_flags: <defaults>
</compile_context>

<pallas_src>
import functools

import jax
import jax.numpy as jnp
from jax import lax
from jax.experimental import pallas as pl
from jax.experimental.pallas import tpu as pltpu


def _round_up(x, m):
    return ((x + m - 1) // m) * m


def _vmem_capacity_bytes():
    try:
        return int(pltpu.get_tpu_info().vmem_capacity_bytes)
    except Exception:
        return 64 * 1024 * 1024          # conservative (v7x-sized) fallback


def _vmem_budget_and_limit(vmem_budget_bytes):
    cap = _vmem_capacity_bytes()
    if vmem_budget_bytes is None:
        # 3/8 of physical VMEM: ~48 MiB on 128-MiB v5e/v6e, ~24 MiB on 64-MiB v7x.
        vmem_budget_bytes = max(16 << 20, (cap * 3) // 8)
    limit = int(min(cap, max(32 << 20, 2 * vmem_budget_bytes + (8 << 20))))
    return vmem_budget_bytes, limit


def _per_row_bytes(c_z_pad, nb_pad, out_dtype, compute_dtype):
    """Per-(q,k)-row VMEM estimate, including one-hot / int32 temporaries."""
    out_b = jnp.dtype(out_dtype).itemsize
    feat_b = jnp.dtype(compute_dtype).itemsize
    return (2 * c_z_pad * out_b      # double-buffered output block
            + 4 * c_z_pad            # f32 MXU accumulator
            + feat_b * nb_pad        # one-hot feature matrix fed to the MXU
            + 4 * nb_pad             # int32 iota / bool compare temporaries
            + 64)                    # index tensors + relayouted columns


def _choose_tile_q(n_q, n_k, per_row_bytes, budget_bytes, batch):
    """Largest query tile (multiple of 8, divisor of n_q) within the VMEM budget.

    For batch==1 the tile is capped at n_q/2 so the grid has >=2 steps and both
    v7x TensorCores get work under dimension_semantics=("parallel", "parallel").
    """
    cands = [t for t in range(8, n_q + 1, 8) if n_q % t == 0]
    if not cands:
        cands = [n_q]
    if batch == 1 and len(cands) > 1:
        two_step = [t for t in cands if 2 * t <= n_q]
        if two_step:
            cands = two_step
    fitting = [t for t in cands if t * n_k * per_row_bytes <= budget_bytes]
    return max(fitting) if fitting else min(cands)


# ----------------------------------------------------------------------------
# Weight preparation: fold bias (and the entity column when possible) into the
# projection table, pad no_bins -> multiple of 128 and c_z -> multiple of 128.
# ----------------------------------------------------------------------------
def _build_chain_weight(w_t, bias, *, max_rel_idx, max_rel_chain,
                        use_chain_relative, compute_dtype):
    no_bins, c_z = w_t.shape
    n_pos = 2 * max_rel_idx + 1
    expected = n_pos
    if use_chain_relative:
        expected += 1
    if max_rel_chain > 0:
        expected += 2 * max_rel_chain + 2
    assert no_bins == expected, (no_bins, expected)

    w = jnp.asarray(w_t, jnp.float32)
    b = jnp.asarray(bias, jnp.float32).reshape(1, c_z)
    # Exactly one rel-pos column fires per pair -> fold the bias into those rows.
    w = w.at[:n_pos].add(b)
    if use_chain_relative and max_rel_chain > 0:
        # entity_same <=> final_rel_chain <= 2*max_rel_chain, and exactly one chain
        # column fires per pair -> fold the entity row into chain rows 0..2*mrc.
        ent_row = w[n_pos:n_pos + 1]          # untouched by the bias fold
        chain0 = n_pos + 1
        w = w.at[chain0:chain0 + 2 * max_rel_chain + 1].add(ent_row)

    nb_pad = _round_up(no_bins, 128)
    c_z_pad = _round_up(c_z, 128)
    w = jnp.pad(w, ((0, nb_pad - no_bins), (0, c_z_pad - c_z)))
    return w.astype(compute_dtype), c_z, c_z_pad, nb_pad


def _build_simple_weight(w_t, bias, *, max_rel_idx, compute_dtype):
    no_bins, c_z = w_t.shape
    assert no_bins == 2 * max_rel_idx + 1, (no_bins, 2 * max_rel_idx + 1)
    w = jnp.asarray(w_t, jnp.float32) + jnp.asarray(bias, jnp.float32).reshape(1, c_z)
    nb_pad = _round_up(no_bins, 128)
    c_z_pad = _round_up(c_z, 128)
    w = jnp.pad(w, ((0, nb_pad - no_bins), (0, c_z_pad - c_z)))
    return w.astype(compute_dtype), c_z, c_z_pad, nb_pad


# ----------------------------------------------------------------------------
# Kernels
# ----------------------------------------------------------------------------
def _relpos_chain_kernel(key_ref, qry_ref, w_ref, out_ref, *,
                         max_rel_idx, max_rel_chain, use_chain_relative):
    kv = key_ref[0]                                    # [4, N]   ids on lanes
    qv = qry_ref[0]                                    # [TQ, 4]  ids on sublanes
    tq = qv.shape[0]
    n = kv.shape[1]
    nb = w_ref.shape[0]                                # no_bins padded to 128

    rik, aik, eik, sik = kv[0:1, :], kv[1:2, :], kv[2:3, :], kv[3:4, :]   # [1, N]
    riq, aiq, eiq, siq = qv[:, 0:1], qv[:, 1:2], qv[:, 2:3], qv[:, 3:4]   # [TQ, 1]

    n_pos = 2 * max_rel_idx + 1
    offset = riq - rik                                 # [TQ, N] lane-dense
    asym_same = aiq == aik
    clipped = jnp.clip(offset + max_rel_idx, 0, 2 * max_rel_idx - 1)
    final_offset = jnp.where(asym_same, clipped, 2 * max_rel_idx)

    # Fused one-hot feature matrix, lane-dense [TQ, N, 128]; bias / entity weights
    # are pre-folded into w_ref so only the rel-pos (+rel-chain) one-hots remain.
    bins = lax.broadcasted_iota(jnp.int32, (tq, n, nb), 2)
    feat = bins == final_offset[:, :, None]

    if use_chain_relative and max_rel_chain == 0:
        # Entity column cannot be folded without a chain one-hot -> keep it explicit.
        ent_same = eiq == eik
        feat = feat | ((bins == n_pos) & ent_same[:, :, None])
    if max_rel_chain > 0:
        col_chain = n_pos + (1 if use_chain_relative else 0)
        ent_same = eiq == eik
        rel_sym = siq - sik
        clipped_chain = jnp.clip(rel_sym + max_rel_chain, 0, 2 * max_rel_chain)
        final_chain = jnp.where(ent_same, clipped_chain, 2 * max_rel_chain + 1)
        feat = feat | (bins == (final_chain[:, :, None] + col_chain))

    rows = tq * n
    feat = feat.astype(w_ref.dtype).reshape(rows, nb)  # free major-dim merge
    acc = jnp.dot(feat, w_ref[...], preferred_element_type=jnp.float32)
    out_ref[0] = acc.astype(out_ref.dtype)


def _relpos_simple_kernel(key_ref, qry_ref, w_ref, out_ref, *, max_rel_idx):
    rik = key_ref[0]                                   # [1, N]
    riq = qry_ref[0]                                   # [TQ, 1]
    tq = riq.shape[0]
    n = rik.shape[1]
    nb = w_ref.shape[0]

    # argmin(|d - arange(-max, max+1)|) == clip(d + max, 0, 2*max) for integer d.
    idx = jnp.clip(riq - rik + max_rel_idx, 0, 2 * max_rel_idx)     # [TQ, N]
    bins = lax.broadcasted_iota(jnp.int32, (tq, n, nb), 2)
    feat = (bins == idx[:, :, None]).astype(w_ref.dtype).reshape(tq * n, nb)
    acc = jnp.dot(feat, w_ref[...], preferred_element_type=jnp.float32)
    out_ref[0] = acc.astype(out_ref.dtype)


# ----------------------------------------------------------------------------
# Wrappers
# ----------------------------------------------------------------------------
def relpos_encoder_chain(residue_index, asym_id, sym_id, entity_id, w_t, bias, *,
                         max_rel_idx, max_rel_chain, use_chain_relative,
                         compute_dtype=jnp.float32, out_dtype=jnp.bfloat16,
                         tile_q=None, vmem_budget_bytes=None):
    """Chain-relative branch (asym_id provided). out_dtype defaults to bf16 (the
    kernel is HBM-writeback bound); pass jnp.float32 for tight reference parity."""
    assert asym_id is not None
    if use_chain_relative or max_rel_chain > 0:
        assert entity_id is not None, "entity_id required for this configuration"
    if max_rel_chain > 0:
        assert sym_id is not None, "sym_id required when max_rel_chain > 0"

    B, N = residue_index.shape
    w_p, c_z, c_z_pad, nb_pad = _build_chain_weight(
        w_t, bias, max_rel_idx=max_rel_idx, max_rel_chain=max_rel_chain,
        use_chain_relative=use_chain_relative, compute_dtype=compute_dtype)

    n_pad = _round_up(N, 8)
    budget, vmem_limit = _vmem_budget_and_limit(vmem_budget_bytes)
    per_row = _per_row_bytes(c_z_pad, nb_pad, out_dtype, compute_dtype)
    fixed = 2 * nb_pad * c_z_pad * jnp.dtype(compute_dtype).itemsize + (1 << 20)
    if tile_q is None:
        tile_q = _choose_tile_q(n_pad, n_pad, per_row, budget - fixed, B)
    assert n_pad % tile_q == 0 and (tile_q % 8 == 0 or tile_q == n_pad), (N, tile_q)

    def _i32(x):
        return (jnp.asarray(x, jnp.int32) if x is not None
                else jnp.zeros((B, N), jnp.int32))

    ids = jnp.stack([_i32(residue_index), _i32(asym_id),
                     _i32(entity_id), _i32(sym_id)], axis=1)          # [B, 4, N]
    if n_pad != N:
        ids = jnp.pad(ids, ((0, 0), (0, 0), (0, n_pad - N)))
    key_ids = ids                                                     # [B, 4, n_pad]
    qry_ids = jnp.transpose(ids, (0, 2, 1))                           # [B, n_pad, 4]

    kernel = functools.partial(
        _relpos_chain_kernel, max_rel_idx=max_rel_idx,
        max_rel_chain=max_rel_chain, use_chain_relative=use_chain_relative)

    out = pl.pallas_call(
        kernel,
        out_shape=jax.ShapeDtypeStruct((B, n_pad * n_pad, c_z_pad), out_dtype),
        grid=(B, n_pad // tile_q),
        in_specs=[pl.BlockSpec((1, 4, n_pad), lambda b, q: (b, 0, 0)),
                  pl.BlockSpec((1, tile_q, 4), lambda b, q: (b, q, 0)),
                  pl.BlockSpec((nb_pad, c_z_pad), lambda b, q: (0, 0))],
        out_specs=pl.BlockSpec((1, tile_q * n_pad, c_z_pad), lambda b, q: (b, q, 0)),
        compiler_params=pltpu.CompilerParams(
            dimension_semantics=("parallel", "parallel"),
            vmem_limit_bytes=vmem_limit),
    )(key_ids, qry_ids, w_p)

    out = out.reshape(B, n_pad, n_pad, c_z_pad)
    if n_pad != N:
        out = out[:, :N, :N]
    if c_z_pad != c_z:
        # Fuses into the consumer under jit; keep c_z % 128 == 0 to avoid it entirely.
        out = out[..., :c_z]
    return out


def relpos_encoder_simple(residue_index, w_t, bias, *, max_rel_idx,
                          compute_dtype=jnp.float32, out_dtype=jnp.bfloat16,
                          tile_q=None, vmem_budget_bytes=None):
    """Simple branch (asym_id is None)."""
    B, N = residue_index.shape
    w_p, c_z, c_z_pad, nb_pad = _build_simple_weight(
        w_t, bias, max_rel_idx=max_rel_idx, compute_dtype=compute_dtype)

    n_pad = _round_up(N, 8)
    budget, vmem_limit = _vmem_budget_and_limit(vmem_budget_bytes)
    per_row = _per_row_bytes(c_z_pad, nb_pad, out_dtype, compute_dtype)
    fixed = 2 * nb_pad * c_z_pad * jnp.dtype(compute_dtype).itemsize + (1 << 20)
    if tile_q is None:
        tile_q = _choose_tile_q(n_pad, n_pad, per_row, budget - fixed, B)
    assert n_pad % tile_q == 0 and (tile_q % 8 == 0 or tile_q == n_pad), (N, tile_q)

    res = jnp.asarray(residue_index, jnp.int32)
    if n_pad != N:
        res = jnp.pad(res, ((0, 0), (0, n_pad - N)))
    key_ids = res.reshape(B, 1, n_pad)
    qry_ids = res.reshape(B, n_pad, 1)

    kernel = functools.partial(_relpos_simple_kernel, max_rel_idx=max_rel_idx)

    out = pl.pallas_call(
        kernel,
        out_shape=jax.ShapeDtypeStruct((B, n_pad * n_pad, c_z_pad), out_dtype),
        grid=(B, n_pad // tile_q),
        in_specs=[pl.BlockSpec((1, 1, n_pad), lambda b, q: (b, 0, 0)),
                  pl.BlockSpec((1, tile_q, 1), lambda b, q: (b, q, 0)),
                  pl.BlockSpec((nb_pad, c_z_pad), lambda b, q: (0, 0))],
        out_specs=pl.BlockSpec((1, tile_q * n_pad, c_z_pad), lambda b, q: (b, q, 0)),
        compiler_params=pltpu.CompilerParams(
            dimension_semantics=("parallel", "parallel"),
            vmem_limit_bytes=vmem_limit),
    )(key_ids, qry_ids, w_p)

    out = out.reshape(B, n_pad, n_pad, c_z_pad)
    if n_pad != N:
        out = out[:, :N, :N]
    if c_z_pad != c_z:
        out = out[..., :c_z]
    return out


# ----------------------------------------------------------------------------
# Pure-JAX references (mirror the PyTorch forward exactly)
# ----------------------------------------------------------------------------
def _ref_chain(residue_index, asym_id, sym_id, entity_id, w_t, bias,
               max_rel_idx, max_rel_chain, use_chain_relative):
    offset = residue_index[..., None] - residue_index[..., None, :]
    asym_same = asym_id[..., None] == asym_id[..., None, :]
    clipped = jnp.clip(offset + max_rel_idx, 0, 2 * max_rel_idx - 1)
    final_offset = jnp.where(asym_same, clipped, 2 * max_rel_idx)
    feats = [jax.nn.one_hot(final_offset, 2 * max_rel_idx + 1, dtype=jnp.float32)]
    ent_same = entity_id[..., None] == entity_id[..., None, :]
    if use_chain_relative:
        feats.append(ent_same.astype(jnp.float32)[..., None])
    if max_rel_chain > 0:
        rel_sym = sym_id[..., None] - sym_id[..., None, :]
        cl = jnp.clip(rel_sym + max_rel_chain, 0, 2 * max_rel_chain)
        fc = jnp.where(ent_same, cl, 2 * max_rel_chain + 1)
        feats.append(jax.nn.one_hot(fc, 2 * max_rel_chain + 2, dtype=jnp.float32))
    rel_feat = jnp.concatenate(feats, axis=-1)
    return rel_feat @ w_t + bias


def _ref_simple(residue_index, w_t, bias, max_rel_idx):
    d = residue_index[..., None] - residue_index[..., None, :]
    boundaries = jnp.arange(-max_rel_idx, max_rel_idx + 1)
    idx = jnp.argmin(jnp.abs(d[..., None] - boundaries), axis=-1)
    oh = jax.nn.one_hot(idx, boundaries.shape[0], dtype=jnp.float32)
    return oh @ w_t + bias


if __name__ == "__main__":
    key = jax.random.PRNGKey(0)
    B, N, c_z = 2, 16, 128                       # c_z=128: lane-aligned, no channel pad
    max_rel_idx, max_rel_chain, use_chain_relative = 4, 2, True
    no_bins = (2 * max_rel_idx + 1) + 1 + (2 * max_rel_chain + 2)   # 16

    ks = jax.random.split(key, 16)
    residue_index = jax.random.randint(ks[0], (B, N), 0, 64, dtype=jnp.int32)
    asym_id = jax.random.randint(ks[1], (B, N), 0, 3, dtype=jnp.int32)
    sym_id = jax.random.randint(ks[2], (B, N), 0, 4, dtype=jnp.int32)
    entity_id = jax.random.randint(ks[3], (B, N), 0, 2, dtype=jnp.int32)

    # Synthetic Linear(no_bins, c_z): PyTorch weight is [c_z, no_bins], bias [c_z].
    weight = 0.1 * jax.random.normal(ks[4], (c_z, no_bins), dtype=jnp.float32)
    bias = 0.1 * jax.random.normal(ks[5], (c_z,), dtype=jnp.float32)
    w_t = jnp.transpose(weight)                                     # [no_bins, c_z]

    ref = _ref_chain(residue_index, asym_id, sym_id, entity_id, w_t, bias,
                     max_rel_idx, max_rel_chain, use_chain_relative)

    # 1) Default path: bf16 output (halves HBM writeback on this mem-bound kernel).
    out_bf16 = jax.block_until_ready(relpos_encoder_chain(
        residue_index, asym_id, sym_id, entity_id, w_t, bias,
        max_rel_idx=max_rel_idx, max_rel_chain=max_rel_chain,
        use_chain_relative=use_chain_relative))
    assert out_bf16.shape == (B, N, N, c_z) and out_bf16.dtype == jnp.bfloat16
    assert jnp.allclose(out_bf16.astype(jnp.float32), ref, atol=2e-2)

    # 2) float32 output: tight match vs the reference.
    out_f32 = jax.block_until_ready(relpos_encoder_chain(
        residue_index, asym_id, sym_id, entity_id, w_t, bias,
        max_rel_idx=max_rel_idx, max_rel_chain=max_rel_chain,
        use_chain_relative=use_chain_relative, out_dtype=jnp.float32))
    assert jnp.allclose(out_f32, ref, atol=1e-5, rtol=1e-5)

    # 3) Multi-tile grid (tile_q=8 -> grid=(B, 2)).
    out_tiled = jax.block_until_ready(relpos_encoder_chain(
        residue_index, asym_id, sym_id, entity_id, w_t, bias,
        max_rel_idx=max_rel_idx, max_rel_chain=max_rel_chain,
        use_chain_relative=use_chain_relative, out_dtype=jnp.float32, tile_q=8))
    assert jnp.allclose(out_tiled, ref, atol=1e-5, rtol=1e-5)

    # 4) N not a multiple of 8 (padded in the wrapper, sliced afterwards).
    N2 = 11
    ri2 = jax.random.randint(ks[6], (B, N2), 0, 64, dtype=jnp.int32)
    ai2 = jax.random.randint(ks[7], (B, N2), 0, 3, dtype=jnp.int32)
    si2 = jax.random.randint(ks[8], (B, N2), 0, 4, dtype=jnp.int32)
    ei2 = jax.random.randint(ks[9], (B, N2), 0, 2, dtype=jnp.int32)
    out_awk = jax.block_until_ready(relpos_encoder_chain(
        ri2, ai2, si2, ei2, w_t, bias,
        max_rel_idx=max_rel_idx, max_rel_chain=max_rel_chain,
        use_chain_relative=use_chain_relative, out_dtype=jnp.float32))
    ref_awk = _ref_chain(ri2, ai2, si2, ei2, w_t, bias,
                         max_rel_idx, max_rel_chain, use_chain_relative)
    assert out_awk.shape == (B, N2, N2, c_z)
    assert jnp.allclose(out_awk, ref_awk, atol=1e-5, rtol=1e-5)

    # 5) bf16 feat/weight compute path (f32 accumulation) - bandwidth/VMEM option.
    out_cbf = jax.block_until_ready(relpos_encoder_chain(
        residue_index, asym_id, sym_id, entity_id, w_t, bias,
        max_rel_idx=max_rel_idx, max_rel_chain=max_rel_chain,
        use_chain_relative=use_chain_relative, compute_dtype=jnp.bfloat16))
    assert jnp.allclose(out_cbf.astype(jnp.float32), ref, atol=5e-2)

    # 6) use_chain_relative only (explicit entity column, no rel-chain one-hot).
    no_bins6 = (2 * max_rel_idx + 1) + 1
    weight6 = 0.1 * jax.random.normal(ks[10], (c_z, no_bins6), dtype=jnp.float32)
    bias6 = 0.1 * jax.random.normal(ks[11], (c_z,), dtype=jnp.float32)
    out6 = jax.block_until_ready(relpos_encoder_chain(
        residue_index, asym_id, None, entity_id, jnp.transpose(weight6), bias6,
        max_rel_idx=max_rel_idx, max_rel_chain=0, use_chain_relative=True,
        out_dtype=jnp.float32))
    ref6 = _ref_chain(residue_index, asym_id, None, entity_id,
                      jnp.transpose(weight6), bias6, max_rel_idx, 0, True)
    assert jnp.allclose(out6, ref6, atol=1e-5, rtol=1e-5)

    # 7) Simple branch (asym_id is None).
    no_bins_s = 2 * max_rel_idx + 1
    weight_s = 0.1 * jax.random.normal(ks[12], (c_z, no_bins_s), dtype=jnp.float32)
    bias_s = 0.1 * jax.random.normal(ks[13], (c_z,), dtype=jnp.float32)
    out_s = jax.block_until_ready(relpos_encoder_simple(
        residue_index, jnp.transpose(weight_s), bias_s,
        max_rel_idx=max_rel_idx, out_dtype=jnp.float32))
    ref_s = _ref_simple(residue_index, jnp.transpose(weight_s), bias_s, max_rel_idx)
    assert out_s.shape == (B, N, N, c_z)
    assert jnp.allclose(out_s, ref_s, atol=1e-5, rtol=1e-5)

    # 8) c_z not a multiple of 128 (padded lane dim, sliced after the kernel).
    c_z8 = 32
    weight8 = 0.1 * jax.random.normal(ks[14], (c_z8, no_bins), dtype=jnp.float32)
    bias8 = 0.1 * jax.random.normal(ks[15], (c_z8,), dtype=jnp.float32)
    out8 = jax.block_until_ready(relpos_encoder_chain(
        residue_index, asym_id, sym_id, entity_id, jnp.transpose(weight8), bias8,
        max_rel_idx=max_rel_idx, max_rel_chain=max_rel_chain,
        use_chain_relative=use_chain_relative, out_dtype=jnp.float32))
    ref8 = _ref_chain(residue_index, asym_id, sym_id, entity_id,
                      jnp.transpose(weight8), bias8,
                      max_rel_idx, max_rel_chain, use_chain_relative)
    assert out8.shape == (B, N, N, c_z8)
    assert jnp.allclose(out8, ref8, atol=1e-5, rtol=1e-5)

    print("KERNEL_OK")
</pallas_src>

<mosaic_0001>
module attributes {stable_mosaic.version = 11 : i64} {
  func.func @_relpos_chain_kernel(%arg0: i32, %arg1: i32, %arg2: memref<1x4x16xi32, #tpu.memory_space<vmem>>, %arg3: memref<1x16x4xi32, #tpu.memory_space<vmem>>, %arg4: memref<128x128xf32, #tpu.memory_space<vmem>>, %arg5: memref<1x256x128xbf16, #tpu.memory_space<vmem>>) attributes {dimension_semantics = [#tpu.dimension_semantics<parallel>, #tpu.dimension_semantics<parallel>], iteration_bounds = array<i64: 2, 1>, scalar_prefetch = 0 : i64, scratch_operands = 0 : i64, tpu.core_type = #tpu.core_type<tc>, window_params = [{transform_indices = @transform_0, window_bounds = array<i64: 1, 4, 16>}, {transform_indices = @transform_1, window_bounds = array<i64: 1, 16, 4>}, {pipeline_mode = #tpu.pipeline_mode<synchronous>, transform_indices = @transform_2, window_bounds = array<i64: 128, 128>}, {transform_indices = @transform_3, window_bounds = array<i64: 1, 256, 128>}]} {
    %c0 = arith.constant 0 : index
    %c0_0 = arith.constant 0 : index
    %c0_1 = arith.constant 0 : index
    %0 = vector.load %arg2[%c0, %c0_0, %c0_1] : memref<1x4x16xi32, #tpu.memory_space<vmem>>, vector<1x4x16xi32>
    %1 = vector.shape_cast %0 : vector<1x4x16xi32> to vector<4x16xi32>
    %c0_2 = arith.constant 0 : index
    %c0_3 = arith.constant 0 : index
    %c0_4 = arith.constant 0 : index
    %2 = vector.load %arg3[%c0_2, %c0_3, %c0_4] : memref<1x16x4xi32, #tpu.memory_space<vmem>>, vector<1x16x4xi32>
    %3 = vector.shape_cast %2 : vector<1x16x4xi32> to vector<16x4xi32>
    %4 = vector.extract_strided_slice %1 {offsets = [0, 0], sizes = [1, 16], strides = [1, 1]} : vector<4x16xi32> to vector<1x16xi32>
    %5 = vector.extract_strided_slice %1 {offsets = [1, 0], sizes = [1, 16], strides = [1, 1]} : vector<4x16xi32> to vector<1x16xi32>
    %6 = vector.extract_strided_slice %1 {offsets = [2, 0], sizes = [1, 16], strides = [1, 1]} : vector<4x16xi32> to vector<1x16xi32>
    %7 = vector.extract_strided_slice %1 {offsets = [3, 0], sizes = [1, 16], strides = [1, 1]} : vector<4x16xi32> to vector<1x16xi32>
    %8 = vector.extract_strided_slice %3 {offsets = [0, 0], sizes = [16, 1], strides = [1, 1]} : vector<16x4xi32> to vector<16x1xi32>
    %9 = vector.extract_strided_slice %3 {offsets = [0, 1], sizes = [16, 1], strides = [1, 1]} : vector<16x4xi32> to vector<16x1xi32>
    %10 = vector.extract_strided_slice %3 {offsets = [0, 2], sizes = [16, 1], strides = [1, 1]} : vector<16x4xi32> to vector<16x1xi32>
    %11 = vector.extract_strided_slice %3 {offsets = [0, 3], sizes = [16, 1], strides = [1, 1]} : vector<16x4xi32> to vector<16x1xi32>
    %12 = vector.broadcast %8 : vector<16x1xi32> to vector<16x16xi32>
    %13 = vector.broadcast %4 : vector<1x16xi32> to vector<16x16xi32>
    %14 = arith.subi %12, %13 : vector<16x16xi32>
    %15 = vector.broadcast %9 : vector<16x1xi32> to vector<16x16xi32>
    %16 = vector.broadcast %5 : vector<1x16xi32> to vector<16x16xi32>
    %17 = arith.cmpi eq, %15, %16 : vector<16x16xi32>
    %c4_i32 = arith.constant 4 : i32
    %18 = vector.broadcast %c4_i32 : i32 to vector<16x16xi32>
    %19 = arith.addi %14, %18 : vector<16x16xi32>
    %c0_i32 = arith.constant 0 : i32
    %c7_i32 = arith.constant 7 : i32
    %20 = vector.broadcast %c0_i32 : i32 to vector<16x16xi32>
    %21 = arith.maxsi %20, %19 : vector<16x16xi32>
    %22 = vector.broadcast %c7_i32 : i32 to vector<16x16xi32>
    %23 = arith.minsi %22, %21 : vector<16x16xi32>
    %c8_i32 = arith.constant 8 : i32
    %24 = vector.broadcast %c8_i32 : i32 to vector<16x16xi32>
    %25 = arith.select %17, %23, %24 : vector<16x16xi1>, vector<16x16xi32>
    %26 = tpu.iota {dimensions = array<i32: 2>} : vector<16x16x128xi32>
    %27 = vector.shape_cast %25 : vector<16x16xi32> to vector<16x16x1xi32>
    %28 = vector.broadcast %27 : vector<16x16x1xi32> to vector<16x16x128xi32>
    %29 = arith.cmpi eq, %26, %28 : vector<16x16x128xi32>
    %30 = vector.broadcast %10 : vector<16x1xi32> to vector<16x16xi32>
    %31 = vector.broadcast %6 : vector<1x16xi32> to vector<16x16xi32>
    %32 = arith.cmpi eq, %30, %31 : vector<16x16xi32>
    %33 = vector.broadcast %11 : vector<16x1xi32> to vector<16x16xi32>
    %34 = vector.broadcast %7 : vector<1x16xi32> to vector<16x16xi32>
    %35 = arith.subi %33, %34 : vector<16x16xi32>
    %c2_i32 = arith.constant 2 : i32
    %36 = vector.broadcast %c2_i32 : i32 to vector<16x16xi32>
    %37 = arith.addi %35, %36 : vector<16x16xi32>
    %c0_i32_5 = arith.constant 0 : i32
    %c4_i32_6 = arith.constant 4 : i32
    %38 = vector.broadcast %c0_i32_5 : i32 to vector<16x16xi32>
    %39 = arith.maxsi %38, %37 : vector<16x16xi32>
    %40 = vector.broadcast %c4_i32_6 : i32 to vector<16x16xi32>
    %41 = arith.minsi %40, %39 : vector<16x16xi32>
    %c5_i32 = arith.constant 5 : i32
    %42 = vector.broadcast %c5_i32 : i32 to vector<16x16xi32>
    %43 = arith.select %32, %41, %42 : vector<16x16xi1>, vector<16x16xi32>
    %44 = vector.shape_cast %43 : vector<16x16xi32> to vector<16x16x1xi32>
    %c10_i32 = arith.constant 10 : i32
    %45 = vector.broadcast %c10_i32 : i32 to vector<16x16x1xi32>
    %46 = arith.addi %44, %45 : vector<16x16x1xi32>
    %47 = vector.broadcast %46 : vector<16x16x1xi32> to vector<16x16x128xi32>
    %48 = arith.cmpi eq, %26, %47 : vector<16x16x128xi32>
    %49 = arith.ori %29, %48 : vector<16x16x128xi1>
    %50 = arith.extui %49 : vector<16x16x128xi1> to vector<16x16x128xi32>
    %51 = arith.sitofp %50 : vector<16x16x128xi32> to vector<16x16x128xf32>
    %52 = vector.shape_cast %51 : vector<16x16x128xf32> to vector<256x128xf32>
    %c0_7 = arith.constant 0 : index
    %c0_8 = arith.constant 0 : index
    %53 = vector.load %arg4[%c0_7, %c0_8] : memref<128x128xf32, #tpu.memory_space<vmem>>, vector<128x128xf32>
    %cst = arith.constant dense<0.000000e+00> : vector<256x128xf32>
    %54 = tpu.matmul %52, %53, %cst {dimension_numbers = #tpu.dot_dimension_numbers<[1], [0], [0], [1], [0, 0, 1, 1], [], []>} : vector<256x128xf32>, vector<128x128xf32>, vector<256x128xf32> -> vector<256x128xf32>
    %55 = arith.truncf %54 : vector<256x128xf32> to vector<256x128xbf16>
    %c0_9 = arith.constant 0 : index
    %c0_10 = arith.constant 0 : index
    %c0_11 = arith.constant 0 : index
    %56 = vector.load %arg5[%c0_9, %c0_10, %c0_11] : memref<1x256x128xbf16, #tpu.memory_space<vmem>>, vector<1x256x128xbf16>
    %57 = vector.shape_cast %56 : vector<1x256x128xbf16> to vector<256x128xbf16>
    %58 = vector.shape_cast %55 : vector<256x128xbf16> to vector<1x256x128xbf16>
    tpu.vector_store %arg5[%c0_9, %c0_10, %c0_11], %58 {strides = array<i32>} : memref<1x256x128xbf16, #tpu.memory_space<vmem>>, vector<1x256x128xbf16>,
    return
  }
  func.func @transform_0(%arg0: i32, %arg1: i32) -> (i32, i32, i32) {
    %c0_i32 = arith.constant 0 : i32
    %c0_i32_0 = arith.constant 0 : i32
    %c0_i32_1 = arith.constant 0 : i32
    return %arg0, %c0_i32, %c0_i32_0 : i32, i32, i32
  }
  func.func @transform_1(%arg0: i32, %arg1: i32) -> (i32, i32, i32) {
    %c0_i32 = arith.constant 0 : i32
    %c0_i32_0 = arith.constant 0 : i32
    return %arg0, %arg1, %c0_i32 : i32, i32, i32
  }
  func.func @transform_2(%arg0: i32, %arg1: i32) -> (i32, i32) {
    %c0_i32 = arith.constant 0 : i32
    %c0_i32_0 = arith.constant 0 : i32
    %c0_i32_1 = arith.constant 0 : i32
    return %c0_i32, %c0_i32_0 : i32, i32
  }
  func.func @transform_3(%arg0: i32, %arg1: i32) -> (i32, i32, i32) {
    %c0_i32 = arith.constant 0 : i32
    %c0_i32_0 = arith.constant 0 : i32
    return %arg0, %arg1, %c0_i32 : i32, i32, i32
  }
}

</mosaic_0001>

<llo_original>
// kernel: tpu_custom_call.1
$region0: #{tpu_custom_call.1}
  #allocation0 [shape = 'u32[]', space=smem, size = 0x4, offset = 0x4, fixed_abs, tag = 'smem constant byte address 0x4 - core index']
  #allocation1 [shape = 'u32[72,128]{1,0:T(1,128)}', space=vmem, size = 0x9000, scoped, tag = 'internal scratch']
  %s0 = inlined_call_operand.vmem [shape: s32[2,4,16], index: 0, kind: input, shape index: {}]
  %s1 = inlined_call_operand.vmem [shape: s32[2,16,4], index: 1, kind: input, shape index: {}]
  %s2 = inlined_call_operand.hbm [shape: f32[128,128], index: 2, kind: input, shape index: {}]
  %s3 = inlined_call_operand.hbm [shape: bf16[2,256,128], index: 3, kind: output, shape index: {}]
  %s4 = sld [smem:[#allocation0]]
  $region49: #{tpu_custom_call.1} parent=0
    _
  %s6 = ssub.s32 1, %s4
  %s7 = scalar_select 0, %s6, %s4
  $region1: #{tpu_custom_call.1} parent=0
    #allocation2 [shape = 'u8[65536]{0}', space=vmem, size = 0x10000, scoped, tag = 'input window, operand 2, single buffered']
    #allocation3 [shape = 's32[2]{0}', space=sflag, size = 0x8, scoped, tag = 'scoped memory for tpu_custom_call.1']
    #allocation4 [shape = 's32[2]{0}', space=sflag, size = 0x8, scoped, tag = 'scoped memory for tpu_custom_call.1']
    #allocation5 [shape = 'u8[131072]{0}', space=vmem, size = 0x20000, scoped, tag = 'output window, operand 0']
    %8 = vsyncpa [#allocation3], 0
    %9 = vsyncpa [#allocation4], 0
    %s10 = scalar_lea.sflag [#allocation4], 1
    %11 = vsyncpa %s10, 0
    loop: start=0, step=1, limit=4
    $region2: #{tpu_custom_call.1} parent=1 // loop_pre_header
      _
    $region3: #{tpu_custom_call.1} parent=1 // loop_header
      %s13 = sphi 0, %s17
      %p14 = scmp.ge.s32.totalorder %s13, 4
      %s20 = sphi 0, %s32
      %s21 = sphi 0, %s28
      %s22 = sphi 0, %s20
      %s23 = sphi 0, %s21
      %s24 = sphi 0, %s22
      %s25 = sphi 0, %s23
      %s35 = sphi 0, %s37
      %s38 = sphi 0, %s35
      %s39 = sphi 0, %s38
      %s55 = sphi 0, %s39
      %s63 = sphi 0, %s65
      %s66 = sphi 0, %s63
      %s67 = sphi 0, %s66
      %s83 = sphi 0, %s67
      %s87 = sphi 0, %s87
      %s89 = sphi 0, %s87
      %s90 = sphi 0, %s89
      %s104 = sphi 0, %s90
      %s112 = sphi 0, %s114
      %s115 = sphi 0, %s112
      %s116 = sphi 0, %s115
      %s132 = sphi 0, %s116
    $region4: #{tpu_custom_call.1} parent=1 // loop_header_branch
      %16 = sbr.rel (%p14) target = $region8
    $region5: #{tpu_custom_call.1} parent=1 // loop_body
      %s18 = ssub.s32 %s13, 1
      %s19 = ssub.s32 %s13, 2
      %s26 = sadd.s32 1, %s21
      %p27 = scmp.ge.s32.totalorder %s26, 1
      %s28 = scalar_select %p27, 0, %s26
      %s29 = sadd.s32 1, %s20
      %s30 = scalar_select %p27, %s29, %s20
      %p31 = scmp.ge.s32.totalorder %s30, 2
      %s32 = scalar_select %p31, 0, %s30
      %s33 = ssub.s32 %s20, %s32
      %p34 = scmp.eq.s32.totalorder %s33, 0
      %s36 = sadd.s32 %s35, 1
      %s37 = scalar_select %p34, %s35, %s36
      %p40 = pneg %p34
      %p41 = scmp.eq.s32.totalorder %s13, 1
      %p42 = por %p40, %p41
      %p43 = scmp.ne.s32.totalorder %s35, %s38
      %p44 = scmp.eq.s32.totalorder %s13, 0
      %p45 = por %p43, %p44
      %p46 = scmp.ne.s32.totalorder %s35, %s38
      %p47 = scmp.eq.s32.totalorder %s18, 1
      %p48 = por %p46, %p47
      %p49 = scmp.ne.s32.totalorder %s38, %s39
      %p50 = scmp.eq.s32.totalorder %s18, 0
      %p51 = por %p49, %p50
      %p52 = scmp.ne.s32.totalorder %s38, %s39
      %p53 = scmp.eq.s32.totalorder %s19, 1
      %p54 = por %p52, %p53
      %p56 = scmp.ne.s32.totalorder %s39, %s55
      %p57 = scmp.eq.s32.totalorder %s19, 0
      %p58 = por %p56, %p57
      %s59 = ssub.s32 %s20, %s32
      %s60 = ssub.s32 %s21, %s28
      %s61 = sor.u32 %s59, %s60
      %p62 = scmp.eq.s32.totalorder %s61, 0
      %s64 = sadd.s32 %s63, 1
      %s65 = scalar_select %p62, %s63, %s64
      %p68 = pneg %p62
      %p69 = scmp.eq.s32.totalorder %s13, 1
      %p70 = por %p68, %p69
      %p71 = scmp.ne.s32.totalorder %s63, %s66
      %p72 = scmp.eq.s32.totalorder %s13, 0
      %p73 = por %p71, %p72
      %p74 = scmp.ne.s32.totalorder %s63, %s66
      %p75 = scmp.eq.s32.totalorder %s18, 1
      %p76 = por %p74, %p75
      %p77 = scmp.ne.s32.totalorder %s66, %s67
      %p78 = scmp.eq.s32.totalorder %s18, 0
      %p79 = por %p77, %p78
      %p80 = scmp.ne.s32.totalorder %s66, %s67
      %p81 = scmp.eq.s32.totalorder %s19, 1
      %p82 = por %p80, %p81
      %p84 = scmp.ne.s32.totalorder %s67, %s83
      %p85 = scmp.eq.s32.totalorder %s19, 0
      %p86 = por %p84, %p85
      %s88 = sadd.s32 %s87, 1
      %p91 = scmp.eq.s32.totalorder %s13, 1
      %p92 = scmp.ne.s32.totalorder %s87, %s89
      %p93 = scmp.eq.s32.totalorder %s13, 0
      %p94 = por %p92, %p93
      %p95 = scmp.ne.s32.totalorder %s87, %s89
      %p96 = scmp.eq.s32.totalorder %s18, 1
      %p97 = por %p95, %p96
      %p98 = scmp.ne.s32.totalorder %s89, %s90
      %p99 = scmp.eq.s32.totalorder %s18, 0
      %p100 = por %p98, %p99
      %p101 = scmp.ne.s32.totalorder %s89, %s90
      %p102 = scmp.eq.s32.totalorder %s19, 1
      %p103 = por %p101, %p102
      %p105 = scmp.ne.s32.totalorder %s90, %s104
      %p106 = scmp.eq.s32.totalorder %s19, 0
      %p107 = por %p105, %p106
      %s108 = ssub.s32 %s20, %s32
      %s109 = ssub.s32 %s21, %s28
      %s110 = sor.u32 %s108, %s109
      %p111 = scmp.eq.s32.totalorder %s110, 0
      %s113 = sadd.s32 %s112, 1
      %s114 = scalar_select %p111, %s112, %s113
      %p117 = pneg %p111
      %p118 = scmp.eq.s32.totalorder %s13, 1
      %p119 = por %p117, %p118
      %p120 = scmp.ne.s32.totalorder %s112, %s115
      %p121 = scmp.eq.s32.totalorder %s13, 0
      %p122 = por %p120, %p121
      %p123 = scmp.ne.s32.totalorder %s112, %s115
      %p124 = scmp.eq.s32.totalorder %s18, 1
      %p125 = por %p123, %p124
      %p126 = scmp.ne.s32.totalorder %s115, %s116
      %p127 = scmp.eq.s32.totalorder %s18, 0
      %p128 = por %p126, %p127
      %p129 = scmp.ne.s32.totalorder %s115, %s116
      %p130 = scmp.eq.s32.totalorder %s19, 1
      %p131 = por %p129, %p130
      %p133 = scmp.ne.s32.totalorder %s116, %s132
      %p134 = scmp.eq.s32.totalorder %s19, 0
      %p135 = por %p133, %p134
      %p136 = scmp.le.s32.totalorder 1, %s13
      %p137 = scmp.lt.s32.totalorder %s13, 3
      %p138 = pnand %p136, %p137
      %p139 = pneg %p138
      // Predicated region
      $region9: #{tpu_custom_call.1} parent=5 // pred_check
        _
      $region10: #{tpu_custom_call.1} parent=5 // pred_check_branch
        %141 = sbr.rel (%p138) target = $region12
      $region11: #{tpu_custom_call.1} parent=5 // pred_region
        %s142 = ssub.s32 %s13, 1
        // Predicated region
        $region13: #{tpu_custom_call.1} parent=11 // pred_check
          %p143 = pneg %p100
        $region14: #{tpu_custom_call.1} parent=11 // pred_check_branch
          %145 = sbr.rel (%p143) target = $region16
        $region15: #{tpu_custom_call.1} parent=11 // pred_region
          %147 = vsyncadd [#allocation3], 0
          %s148 = sshll.u32 %s2, 4
          %s149 = int_to_ptr.hbm [resolvable:$true] %s148
          %s150 = sshll.u32 [#allocation2], 4
          %s151 = int_to_ptr.vmem [resolvable:$true] %s150
          %156 = dma.hbm_to_vmem [thread:$0]  %s149, 2048, %s151, [#allocation3], 128, 128, 8
        $region16: #{tpu_custom_call.1} parent=11 // pred_fallthru
          _
      $region12: #{tpu_custom_call.1} parent=5 // pred_fallthru
        _
      %p157 = scmp.lt.s32.totalorder %s13, 2
      // Predicated region
      $region17: #{tpu_custom_call.1} parent=5 // pred_check
        %p158 = pneg %p157
      $region18: #{tpu_custom_call.1} parent=5 // pred_check_branch
        %160 = sbr.rel (%p158) target = $region20
      $region19: #{tpu_custom_call.1} parent=5 // pred_region
        // Predicated region
        $region21: #{tpu_custom_call.1} parent=19 // pred_check
          %p161 = pneg %p45
        $region22: #{tpu_custom_call.1} parent=19 // pred_check_branch
          %163 = sbr.rel (%p161) target = $region24
        $region23: #{tpu_custom_call.1} parent=19 // pred_region
          %p164 = scmp.lt.s32.totalorder %s20, 1
          %s165 = scalar_select %p164, %s20, 1
          %s166 = smul.addr %s165, 4
          %s167 = scalar_lea.vmem %s0, %s166
        $region24: #{tpu_custom_call.1} parent=19 // pred_fallthru
          _
        // Predicated region
        $region25: #{tpu_custom_call.1} parent=19 // pred_check
          %p168 = pneg %p73
        $region26: #{tpu_custom_call.1} parent=19 // pred_check_branch
          %170 = sbr.rel (%p168) target = $region28
        $region27: #{tpu_custom_call.1} parent=19 // pred_region
          %s171 = smul.u32 2, %s21
          %p172 = scmp.lt.s32.totalorder %s20, 1
          %s173 = scalar_select %p172, %s20, 1
          %p174 = scmp.lt.s32.totalorder %s171, 1
          %s175 = scalar_select %p174, %s171, 1
          %s176 = smul.addr %s173, 2
          %s177 = sadd.s32 %s175, %s176
          %s178 = smul.addr %s177, 8
          %s179 = scalar_lea.vmem %s1, %s178
          %s180 = smul.u32 2, %s21
        $region28: #{tpu_custom_call.1} parent=19 // pred_fallthru
          _
      $region20: #{tpu_custom_call.1} parent=5 // pred_fallthru
        _
      %p181 = scmp.le.s32.totalorder 1, %s13
      %p182 = scmp.lt.s32.totalorder %s13, 3
      %p183 = pnand %p181, %p182
      %p184 = pneg %p183
      // Predicated region
      $region29: #{tpu_custom_call.1} parent=5 // pred_check
        _
      $region30: #{tpu_custom_call.1} parent=5 // pred_check_branch
        %186 = sbr.rel (%p183) target = $region32
      $region31: #{tpu_custom_call.1} parent=5 // pred_region
        %s187 = ssub.s32 %s13, 1
        // Predicated region
        $region33: #{tpu_custom_call.1} parent=31 // pred_check
          %p188 = pneg %p100
        $region34: #{tpu_custom_call.1} parent=31 // pred_check_branch
          %190 = sbr.rel (%p188) target = $region36
        $region35: #{tpu_custom_call.1} parent=31 // pred_region
          %192 = dma.done [#allocation3], 2048
        $region36: #{tpu_custom_call.1} parent=31 // pred_fallthru
          _
        %p193 = scmp.lt.s32.totalorder %s22, 1
        %s194 = scalar_select %p193, %s22, 1
        %s195 = smul.addr %s194, 4
        %s196 = scalar_lea.vmem %s0, %s195
        %p197 = pneg %p51
        %p198 = pneg %p48
        %s199 = smul.u32 2, %s23
        %p200 = scmp.lt.s32.totalorder %s22, 1
        %s201 = scalar_select %p200, %s22, 1
        %p202 = scmp.lt.s32.totalorder %s199, 1
        %s203 = scalar_select %p202, %s199, 1
        %s204 = smul.addr %s201, 2
        %s205 = sadd.s32 %s203, %s204
        %s206 = smul.addr %s205, 8
        %s207 = scalar_lea.vmem %s1, %s206
        %p208 = pneg %p79
        %p209 = pneg %p76
        %p210 = pneg %p100
        %p211 = pneg %p97
        %p212 = pneg %p128
        %p213 = pneg %p125
        %s214 = sand.u32 %s115, 1
        %s215 = scalar_lea.sflag [#allocation4], %s214
        %s216 = sand.u32 %s115, 1
        %s217 = smul.addr %s216, 128
        %s218 = scalar_lea.vmem [#allocation5], %s217
        %p219 = scmp.lt.s32.totalorder %s22, 1
        %s220 = scalar_select %p219, %s22, 1
        %s221 = smul.addr %s220, 4
        %s222 = scalar_lea.vmem %s0, %s221
        %s223 = smul.u32 2, %s23
        %p224 = scmp.lt.s32.totalorder %s22, 1
        %s225 = scalar_select %p224, %s22, 1
        %p226 = scmp.lt.s32.totalorder %s223, 1
        %s227 = scalar_select %p226, %s223, 1
        %s228 = smul.addr %s225, 2
        %s229 = sadd.s32 %s227, %s228
        %s230 = smul.addr %s229, 8
        %s231 = scalar_lea.vmem %s1, %s230
        %s232 = smul.u32 2, %s23
        %s233 = smul.u32 32, %s23
        %v234 = vld [vmem:[%s222] sm:$0xf]
        %v235 = vld [vmem:[%s231] sm:$0xff]
        %v236 = vld [vmem:[%s231 + $0x8] sm:$0xff]
        %237 = vset.pattern.permute.xlu0 0
        %238 = vperm.xlu0 %237, %v235
        %v239 = vpop.permute.xlu0 %238
        %240 = vset.pattern.permute.xlu0 0
        %241 = vperm.xlu0 %240, %v236
        %v242 = vpop.permute.xlu0 %241
        %v243 = vperm.slane %v234, 0
        %v244 = vsub.s32 %v239, %v243
        %v245 = vsub.s32 %v242, %v243
        %246 = vset.pattern.permute.xlu0 1
        %247 = vperm.xlu0 %246, %v235
        %v248 = vpop.permute.xlu0 %247
        %249 = vset.pattern.permute.xlu0 1
        %250 = vperm.xlu0 %249, %v236
        %v251 = vpop.permute.xlu0 %250
        %v252 = vperm.slane %v234, 1
        %vm253 = vcmp.eq.s32.totalorder %v248, %v252
        %vm254 = vcmp.eq.s32.totalorder %v251, %v252
        %v255 = vadd.s32 %v244, 4
        %v256 = vadd.s32 %v245, 4
        %vm257 = vcmp.gt.s32.totalorder %v255, 0
        %v258 = vsel %vm257, %v255, 0
        %vm259 = vcmp.gt.s32.totalorder %v256, 0
        %v260 = vsel %vm259, %v256, 0
        %vm261 = vcmp.lt.s32.totalorder %v258, 7
        %v262 = vsel %vm261, %v258, 7
        %vm263 = vcmp.lt.s32.totalorder %v260, 7
        %v264 = vsel %vm263, %v260, 7
        %v265 = vsel %vm253, %v262, 8
        %v266 = vsel %vm254, %v264, 8
        %v267 = vlaneseq
        %v268 = vand.u32 %v267, 127
        %v269 = vperm.slane %v265, 0
        %v270 = vlaneseq
        %v271 = vshrl.u32 %v270, 7
        %273 = vset.pattern.permute.xlu0 %v271
        %274 = vperm.xlu0 %273, %v269
        %v275 = vpop.permute.xlu0 %274
        %v276 = vlaneseq
        %v277 = vshrl.u32 %v276, 7
        %v278 = vadd.s32 %v277, 8
        %279 = vset.pattern.permute.xlu0 %v278
        %280 = vperm.xlu0 %279, %v269
        %v281 = vpop.permute.xlu0 %280
        %v282 = vperm.slane %v265, 1
        %v283 = vlaneseq
        %v284 = vshrl.u32 %v283, 7
        %286 = vset.pattern.permute.xlu0 %v284
        %287 = vperm.xlu0 %286, %v282
        %v288 = vpop.permute.xlu0 %287
        %v289 = vlaneseq
        %v290 = vshrl.u32 %v289, 7
        %v291 = vadd.s32 %v290, 8
        %292 = vset.pattern.permute.xlu0 %v291
        %293 = vperm.xlu0 %292, %v282
        %v294 = vpop.permute.xlu0 %293
        %v295 = vperm.slane %v265, 2
        %v296 = vlaneseq
        %v297 = vshrl.u32 %v296, 7
        %299 = vset.pattern.permute.xlu0 %v297
        %300 = vperm.xlu0 %299, %v295
        %v301 = vpop.permute.xlu0 %300
        %v302 = vlaneseq
        %v303 = vshrl.u32 %v302, 7
        %v304 = vadd.s32 %v303, 8
        %305 = vset.pattern.permute.xlu0 %v304
        %306 = vperm.xlu0 %305, %v295
        %v307 = vpop.permute.xlu0 %306
        %v308 = vperm.slane %v265, 3
        %v309 = vlaneseq
        %v310 = vshrl.u32 %v309, 7
        %312 = vset.pattern.permute.xlu0 %v310
        %313 = vperm.xlu0 %312, %v308
        %v314 = vpop.permute.xlu0 %313
        %v315 = vlaneseq
        %v316 = vshrl.u32 %v315, 7
        %v317 = vadd.s32 %v316, 8
        %318 = vset.pattern.permute.xlu0 %v317
        %319 = vperm.xlu0 %318, %v308
        %v320 = vpop.permute.xlu0 %319
        %v321 = vperm.slane %v265, 4
        %v322 = vlaneseq
        %v323 = vshrl.u32 %v322, 7
        %325 = vset.pattern.permute.xlu0 %v323
        %326 = vperm.xlu0 %325, %v321
        %v327 = vpop.permute.xlu0 %326
        %v328 = vlaneseq
        %v329 = vshrl.u32 %v328, 7
        %v330 = vadd.s32 %v329, 8
        %331 = vset.pattern.permute.xlu0 %v330
        %332 = vperm.xlu0 %331, %v321
        %v333 = vpop.permute.xlu0 %332
        %v334 = vperm.slane %v265, 5
        %v335 = vlaneseq
        %v336 = vshrl.u32 %v335, 7
        %338 = vset.pattern.permute.xlu0 %v336
        %339 = vperm.xlu0 %338, %v334
        %v340 = vpop.permute.xlu0 %339
        %v341 = vlaneseq
        %v342 = vshrl.u32 %v341, 7
        %v343 = vadd.s32 %v342, 8
        %344 = vset.pattern.permute.xlu0 %v343
        %345 = vperm.xlu0 %344, %v334
        %v346 = vpop.permute.xlu0 %345
        %v347 = vperm.slane %v265, 6
        %v348 = vlaneseq
        %v349 = vshrl.u32 %v348, 7
        %351 = vset.pattern.permute.xlu0 %v349
        %352 = vperm.xlu0 %351, %v347
        %v353 = vpop.permute.xlu0 %352
        %v354 = vlaneseq
        %v355 = vshrl.u32 %v354, 7
        %v356 = vadd.s32 %v355, 8
        %357 = vset.pattern.permute.xlu0 %v356
        %358 = vperm.xlu0 %357, %v347
        %v359 = vpop.permute.xlu0 %358
        %v360 = vperm.slane %v265, 7
        %v361 = vlaneseq
        %v362 = vshrl.u32 %v361, 7
        %364 = vset.pattern.permute.xlu0 %v362
        %365 = vperm.xlu0 %364, %v360
        %v366 = vpop.permute.xlu0 %365
        %v367 = vlaneseq
        %v368 = vshrl.u32 %v367, 7
        %v369 = vadd.s32 %v368, 8
        %370 = vset.pattern.permute.xlu0 %v369
        %371 = vperm.xlu0 %370, %v360
        %v372 = vpop.permute.xlu0 %371
        %v373 = vperm.slane %v266, 0
        %v374 = vlaneseq
        %v375 = vshrl.u32 %v374, 7
        %377 = vset.pattern.permute.xlu0 %v375
        %378 = vperm.xlu0 %377, %v373
        %v379 = vpop.permute.xlu0 %378
        %v380 = vlaneseq
        %v381 = vshrl.u32 %v380, 7
        %v382 = vadd.s32 %v381, 8
        %383 = vset.pattern.permute.xlu0 %v382
        %384 = vperm.xlu0 %383, %v373
        %v385 = vpop.permute.xlu0 %384
        %v386 = vperm.slane %v266, 1
        %v387 = vlaneseq
        %v388 = vshrl.u32 %v387, 7
        %390 = vset.pattern.permute.xlu0 %v388
        %391 = vperm.xlu0 %390, %v386
        %v392 = vpop.permute.xlu0 %391
        %v393 = vlaneseq
        %v394 = vshrl.u32 %v393, 7
        %v395 = vadd.s32 %v394, 8
        %396 = vset.pattern.permute.xlu0 %v395
        %397 = vperm.xlu0 %396, %v386
        %v398 = vpop.permute.xlu0 %397
        %v399 = vperm.slane %v266, 2
        %v400 = vlaneseq
        %v401 = vshrl.u32 %v400, 7
        %403 = vset.pattern.permute.xlu0 %v401
        %404 = vperm.xlu0 %403, %v399
        %v405 = vpop.permute.xlu0 %404
        %v406 = vlaneseq
        %v407 = vshrl.u32 %v406, 7
        %v408 = vadd.s32 %v407, 8
        %409 = vset.pattern.permute.xlu0 %v408
        %410 = vperm.xlu0 %409, %v399
        %v411 = vpop.permute.xlu0 %410
        %v412 = vperm.slane %v266, 3
        %v413 = vlaneseq
        %v414 = vshrl.u32 %v413, 7
        %416 = vset.pattern.permute.xlu0 %v414
        %417 = vperm.xlu0 %416, %v412
        %v418 = vpop.permute.xlu0 %417
        %v419 = vlaneseq
        %v420 = vshrl.u32 %v419, 7
        %v421 = vadd.s32 %v420, 8
        %422 = vset.pattern.permute.xlu0 %v421
        %423 = vperm.xlu0 %422, %v412
        %v424 = vpop.permute.xlu0 %423
        %v425 = vperm.slane %v266, 4
        %v426 = vlaneseq
        %v427 = vshrl.u32 %v426, 7
        %429 = vset.pattern.permute.xlu0 %v427
        %430 = vperm.xlu0 %429, %v425
        %v431 = vpop.permute.xlu0 %430
        %v432 = vlaneseq
        %v433 = vshrl.u32 %v432, 7
        %v434 = vadd.s32 %v433, 8
        %435 = vset.pattern.permute.xlu0 %v434
        %436 = vperm.xlu0 %435, %v425
        %v437 = vpop.permute.xlu0 %436
        %v438 = vperm.slane %v266, 5
        %v439 = vlaneseq
        %v440 = vshrl.u32 %v439, 7
        %442 = vset.pattern.permute.xlu0 %v440
        %443 = vperm.xlu0 %442, %v438
        %v444 = vpop.permute.xlu0 %443
        %v445 = vlaneseq
        %v446 = vshrl.u32 %v445, 7
        %v447 = vadd.s32 %v446, 8
        %448 = vset.pattern.permute.xlu0 %v447
        %449 = vperm.xlu0 %448, %v438
        %v450 = vpop.permute.xlu0 %449
        %v451 = vperm.slane %v266, 6
        %v452 = vlaneseq
        %v453 = vshrl.u32 %v452, 7
        %455 = vset.pattern.permute.xlu0 %v453
        %456 = vperm.xlu0 %455, %v451
        %v457 = vpop.permute.xlu0 %456
        %v458 = vlaneseq
        %v459 = vshrl.u32 %v458, 7
        %v460 = vadd.s32 %v459, 8
        %461 = vset.pattern.permute.xlu0 %v460
        %462 = vperm.xlu0 %461, %v451
        %v463 = vpop.permute.xlu0 %462
        %v464 = vperm.slane %v266, 7
        %v465 = vlaneseq
        %v466 = vshrl.u32 %v465, 7
        %468 = vset.pattern.permute.xlu0 %v466
        %469 = vperm.xlu0 %468, %v464
        %v470 = vpop.permute.xlu0 %469
        %v471 = vlaneseq
        %v472 = vshrl.u32 %v471, 7
        %v473 = vadd.s32 %v472, 8
        %474 = vset.pattern.permute.xlu0 %v473
        %475 = vperm.xlu0 %474, %v464
        %v476 = vpop.permute.xlu0 %475
        %vm477 = vcmp.eq.s32.totalorder %v268, %v275
        %vm478 = vcmp.eq.s32.totalorder %v268, %v281
        %vm479 = vcmp.eq.s32.totalorder %v268, %v288
        %vm480 = vcmp.eq.s32.totalorder %v268, %v294
        %vm481 = vcmp.eq.s32.totalorder %v268, %v301
        %vm482 = vcmp.eq.s32.totalorder %v268, %v307
        %vm483 = vcmp.eq.s32.totalorder %v268, %v314
        %vm484 = vcmp.eq.s32.totalorder %v268, %v320
        %vm485 = vcmp.eq.s32.totalorder %v268, %v327
        %vm486 = vcmp.eq.s32.totalorder %v268, %v333
        %vm487 = vcmp.eq.s32.totalorder %v268, %v340
        %vm488 = vcmp.eq.s32.totalorder %v268, %v346
        %vm489 = vcmp.eq.s32.totalorder %v268, %v353
        %vm490 = vcmp.eq.s32.totalorder %v268, %v359
        %vm491 = vcmp.eq.s32.totalorder %v268, %v366
        %vm492 = vcmp.eq.s32.totalorder %v268, %v372
        %vm493 = vcmp.eq.s32.totalorder %v268, %v379
        %vm494 = vcmp.eq.s32.totalorder %v268, %v385
        %vm495 = vcmp.eq.s32.totalorder %v268, %v392
        %vm496 = vcmp.eq.s32.totalorder %v268, %v398
        %vm497 = vcmp.eq.s32.totalorder %v268, %v405
        %vm498 = vcmp.eq.s32.totalorder %v268, %v411
        %vm499 = vcmp.eq.s32.totalorder %v268, %v418
        %vm500 = vcmp.eq.s32.totalorder %v268, %v424
        %vm501 = vcmp.eq.s32.totalorder %v268, %v431
        %vm502 = vcmp.eq.s32.totalorder %v268, %v437
        %vm503 = vcmp.eq.s32.totalorder %v268, %v444
        %vm504 = vcmp.eq.s32.totalorder %v268, %v450
        %vm505 = vcmp.eq.s32.totalorder %v268, %v457
        %vm506 = vcmp.eq.s32.totalorder %v268, %v463
        %vm507 = vcmp.eq.s32.totalorder %v268, %v470
        %vm508 = vcmp.eq.s32.totalorder %v268, %v476
        %509 = vset.pattern.permute.xlu0 2
        %510 = vperm.xlu0 %509, %v235
        %v511 = vpop.permute.xlu0 %510
        %512 = vset.pattern.permute.xlu0 2
        %513 = vperm.xlu0 %512, %v236
        %v514 = vpop.permute.xlu0 %513
        %v515 = vperm.slane %v234, 2
        %vm516 = vcmp.eq.s32.totalorder %v511, %v515
        %vm517 = vcmp.eq.s32.totalorder %v514, %v515
        %518 = vset.pattern.permute.xlu0 3
        %519 = vperm.xlu0 %518, %v235
        %v520 = vpop.permute.xlu0 %519
        %521 = vset.pattern.permute.xlu0 3
        %522 = vperm.xlu0 %521, %v236
        %v523 = vpop.permute.xlu0 %522
        %v524 = vperm.slane %v234, 3
        %v525 = vsub.s32 %v520, %v524
        %v526 = vsub.s32 %v523, %v524
        %v527 = vadd.s32 %v525, 2
        %v528 = vadd.s32 %v526, 2
        %vm529 = vcmp.gt.s32.totalorder %v527, 0
        %v530 = vsel %vm529, %v527, 0
        %vm531 = vcmp.gt.s32.totalorder %v528, 0
        %v532 = vsel %vm531, %v528, 0
        %vm533 = vcmp.lt.s32.totalorder %v530, 4
        %v534 = vsel %vm533, %v530, 4
        %vm535 = vcmp.lt.s32.totalorder %v532, 4
        %v536 = vsel %vm535, %v532, 4
        %v537 = vsel %vm516, %v534, 5
        %v538 = vsel %vm517, %v536, 5
        %v539 = vperm.slane %v537, 0
        %v540 = vlaneseq
        %v541 = vshrl.u32 %v540, 7
        %543 = vset.pattern.permute.xlu0 %v541
        %544 = vperm.xlu0 %543, %v539
        %v545 = vpop.permute.xlu0 %544
        %v546 = vlaneseq
        %v547 = vshrl.u32 %v546, 7
        %v548 = vadd.s32 %v547, 8
        %549 = vset.pattern.permute.xlu0 %v548
        %550 = vperm.xlu0 %549, %v539
        %v551 = vpop.permute.xlu0 %550
        %v552 = vperm.slane %v537, 1
        %v553 = vlaneseq
        %v554 = vshrl.u32 %v553, 7
        %556 = vset.pattern.permute.xlu0 %v554
        %557 = vperm.xlu0 %556, %v552
        %v558 = vpop.permute.xlu0 %557
        %v559 = vlaneseq
        %v560 = vshrl.u32 %v559, 7
        %v561 = vadd.s32 %v560, 8
        %562 = vset.pattern.permute.xlu0 %v561
        %563 = vperm.xlu0 %562, %v552
        %v564 = vpop.permute.xlu0 %563
        %v565 = vperm.slane %v537, 2
        %v566 = vlaneseq
        %v567 = vshrl.u32 %v566, 7
        %569 = vset.pattern.permute.xlu0 %v567
        %570 = vperm.xlu0 %569, %v565
        %v571 = vpop.permute.xlu0 %570
        %v572 = vlaneseq
        %v573 = vshrl.u32 %v572, 7
        %v574 = vadd.s32 %v573, 8
        %575 = vset.pattern.permute.xlu0 %v574
        %576 = vperm.xlu0 %575, %v565
        %v577 = vpop.permute.xlu0 %576
        %v578 = vperm.slane %v537, 3
        %v579 = vlaneseq
        %v580 = vshrl.u32 %v579, 7
        %582 = vset.pattern.permute.xlu0 %v580
        %583 = vperm.xlu0 %582, %v578
        %v584 = vpop.permute.xlu0 %583
        %v585 = vlaneseq
        %v586 = vshrl.u32 %v585, 7
        %v587 = vadd.s32 %v586, 8
        %588 = vset.pattern.permute.xlu0 %v587
        %589 = vperm.xlu0 %588, %v578
        %v590 = vpop.permute.xlu0 %589
        %v591 = vperm.slane %v537, 4
        %v592 = vlaneseq
        %v593 = vshrl.u32 %v592, 7
        %595 = vset.pattern.permute.xlu0 %v593
        %596 = vperm.xlu0 %595, %v591
        %v597 = vpop.permute.xlu0 %596
        %v598 = vlaneseq
        %v599 = vshrl.u32 %v598, 7
        %v600 = vadd.s32 %v599, 8
        %601 = vset.pattern.permute.xlu0 %v600
        %602 = vperm.xlu0 %601, %v591
        %v603 = vpop.permute.xlu0 %602
        %v604 = vperm.slane %v537, 5
        %v605 = vlaneseq
        %v606 = vshrl.u32 %v605, 7
        %608 = vset.pattern.permute.xlu0 %v606
        %609 = vperm.xlu0 %608, %v604
        %v610 = vpop.permute.xlu0 %609
        %v611 = vlaneseq
        %v612 = vshrl.u32 %v611, 7
        %v613 = vadd.s32 %v612, 8
        %614 = vset.pattern.permute.xlu0 %v613
        %615 = vperm.xlu0 %614, %v604
        %v616 = vpop.permute.xlu0 %615
        %v617 = vperm.slane %v537, 6
        %v618 = vlaneseq
        %v619 = vshrl.u32 %v618, 7
        %621 = vset.pattern.permute.xlu0 %v619
        %622 = vperm.xlu0 %621, %v617
        %v623 = vpop.permute.xlu0 %622
        %v624 = vlaneseq
        %v625 = vshrl.u32 %v624, 7
        %v626 = vadd.s32 %v625, 8
        %627 = vset.pattern.permute.xlu0 %v626
        %628 = vperm.xlu0 %627, %v617
        %v629 = vpop.permute.xlu0 %628
        %v630 = vperm.slane %v537, 7
        %v631 = vlaneseq
        %v632 = vshrl.u32 %v631, 7
        %634 = vset.pattern.permute.xlu0 %v632
        %635 = vperm.xlu0 %634, %v630
        %v636 = vpop.permute.xlu0 %635
        %v637 = vlaneseq
        %v638 = vshrl.u32 %v637, 7
        %v639 = vadd.s32 %v638, 8
        %640 = vset.pattern.permute.xlu0 %v639
        %641 = vperm.xlu0 %640, %v630
        %v642 = vpop.permute.xlu0 %641
        %v643 = vperm.slane %v538, 0
        %v644 = vlaneseq
        %v645 = vshrl.u32 %v644, 7
        %647 = vset.pattern.permute.xlu0 %v645
        %648 = vperm.xlu0 %647, %v643
        %v649 = vpop.permute.xlu0 %648
        %v650 = vlaneseq
        %v651 = vshrl.u32 %v650, 7
        %v652 = vadd.s32 %v651, 8
        %653 = vset.pattern.permute.xlu0 %v652
        %654 = vperm.xlu0 %653, %v643
        %v655 = vpop.permute.xlu0 %654
        %v656 = vperm.slane %v538, 1
        %v657 = vlaneseq
        %v658 = vshrl.u32 %v657, 7
        %660 = vset.pattern.permute.xlu0 %v658
        %661 = vperm.xlu0 %660, %v656
        %v662 = vpop.permute.xlu0 %661
        %v663 = vlaneseq
        %v664 = vshrl.u32 %v663, 7
        %v665 = vadd.s32 %v664, 8
        %666 = vset.pattern.permute.xlu0 %v665
        %667 = vperm.xlu0 %666, %v656
        %v668 = vpop.permute.xlu0 %667
        %v669 = vperm.slane %v538, 2
        %v670 = vlaneseq
        %v671 = vshrl.u32 %v670, 7
        %673 = vset.pattern.permute.xlu0 %v671
        %674 = vperm.xlu0 %673, %v669
        %v675 = vpop.permute.xlu0 %674
        %v676 = vlaneseq
        %v677 = vshrl.u32 %v676, 7
        %v678 = vadd.s32 %v677, 8
        %679 = vset.pattern.permute.xlu0 %v678
        %680 = vperm.xlu0 %679, %v669
        %v681 = vpop.permute.xlu0 %680
        %v682 = vperm.slane %v538, 3
        %v683 = vlaneseq
        %v684 = vshrl.u32 %v683, 7
        %686 = vset.pattern.permute.xlu0 %v684
        %687 = vperm.xlu0 %686, %v682
        %v688 = vpop.permute.xlu0 %687
        %v689 = vlaneseq
        %v690 = vshrl.u32 %v689, 7
        %v691 = vadd.s32 %v690, 8
        %692 = vset.pattern.permute.xlu0 %v691
        %693 = vperm.xlu0 %692, %v682
        %v694 = vpop.permute.xlu0 %693
        %v695 = vperm.slane %v538, 4
        %v696 = vlaneseq
        %v697 = vshrl.u32 %v696, 7
        %699 = vset.pattern.permute.xlu0 %v697
        %700 = vperm.xlu0 %699, %v695
        %v701 = vpop.permute.xlu0 %700
        %v702 = vlaneseq
        %v703 = vshrl.u32 %v702, 7
        %v704 = vadd.s32 %v703, 8
        %705 = vset.pattern.permute.xlu0 %v704
        %706 = vperm.xlu0 %705, %v695
        %v707 = vpop.permute.xlu0 %706
        %v708 = vperm.slane %v538, 5
        %v709 = vlaneseq
        %v710 = vshrl.u32 %v709, 7
        %712 = vset.pattern.permute.xlu0 %v710
        %713 = vperm.xlu0 %712, %v708
        %v714 = vpop.permute.xlu0 %713
        %v715 = vlaneseq
        %v716 = vshrl.u32 %v715, 7
        %v717 = vadd.s32 %v716, 8
        %718 = vset.pattern.permute.xlu0 %v717
        %719 = vperm.xlu0 %718, %v708
        %v720 = vpop.permute.xlu0 %719
        %v721 = vperm.slane %v538, 6
        %v722 = vlaneseq
        %v723 = vshrl.u32 %v722, 7
        %725 = vset.pattern.permute.xlu0 %v723
        %726 = vperm.xlu0 %725, %v721
        %v727 = vpop.permute.xlu0 %726
        %v728 = vlaneseq
        %v729 = vshrl.u32 %v728, 7
        %v730 = vadd.s32 %v729, 8
        %731 = vset.pattern.permute.xlu0 %v730
        %732 = vperm.xlu0 %731, %v721
        %v733 = vpop.permute.xlu0 %732
        %v734 = vperm.slane %v538, 7
        %v735 = vlaneseq
        %v736 = vshrl.u32 %v735, 7
        %738 = vset.pattern.permute.xlu0 %v736
        %739 = vperm.xlu0 %738, %v734
        %v740 = vpop.permute.xlu0 %739
        %v741 = vlaneseq
        %v742 = vshrl.u32 %v741, 7
        %v743 = vadd.s32 %v742, 8
        %744 = vset.pattern.permute.xlu0 %v743
        %745 = vperm.xlu0 %744, %v734
        %v746 = vpop.permute.xlu0 %745
        %v747 = vadd.s32 %v545, 10
        %v748 = vadd.s32 %v551, 10
        %v749 = vadd.s32 %v558, 10
        %v750 = vadd.s32 %v564, 10
        %v751 = vadd.s32 %v571, 10
        %v752 = vadd.s32 %v577, 10
        %v753 = vadd.s32 %v584, 10
        %v754 = vadd.s32 %v590, 10
        %v755 = vadd.s32 %v597, 10
        %v756 = vadd.s32 %v603, 10
        %v757 = vadd.s32 %v610, 10
        %v758 = vadd.s32 %v616, 10
        %v759 = vadd.s32 %v623, 10
        %v760 = vadd.s32 %v629, 10
        %v761 = vadd.s32 %v636, 10
        %v762 = vadd.s32 %v642, 10
        %v763 = vadd.s32 %v649, 10
        %v764 = vadd.s32 %v655, 10
        %v765 = vadd.s32 %v662, 10
        %v766 = vadd.s32 %v668, 10
        %v767 = vadd.s32 %v675, 10
        %v768 = vadd.s32 %v681, 10
        %v769 = vadd.s32 %v688, 10
        %v770 = vadd.s32 %v694, 10
        %v771 = vadd.s32 %v701, 10
        %v772 = vadd.s32 %v707, 10
        %v773 = vadd.s32 %v714, 10
        %v774 = vadd.s32 %v720, 10
        %v775 = vadd.s32 %v727, 10
        %v776 = vadd.s32 %v733, 10
        %v777 = vadd.s32 %v740, 10
        %v778 = vadd.s32 %v746, 10
        %vm779 = vcmp.eq.s32.totalorder %v268, %v747
        %vm780 = vcmp.eq.s32.totalorder %v268, %v748
        %vm781 = vcmp.eq.s32.totalorder %v268, %v749
        %vm782 = vcmp.eq.s32.totalorder %v268, %v750
        %vm783 = vcmp.eq.s32.totalorder %v268, %v751
        %vm784 = vcmp.eq.s32.totalorder %v268, %v752
        %vm785 = vcmp.eq.s32.totalorder %v268, %v753
        %vm786 = vcmp.eq.s32.totalorder %v268, %v754
        %vm787 = vcmp.eq.s32.totalorder %v268, %v755
        %vm788 = vcmp.eq.s32.totalorder %v268, %v756
        %vm789 = vcmp.eq.s32.totalorder %v268, %v757
        %vm790 = vcmp.eq.s32.totalorder %v268, %v758
        %vm791 = vcmp.eq.s32.totalorder %v268, %v759
        %vm792 = vcmp.eq.s32.totalorder %v268, %v760
        %vm793 = vcmp.eq.s32.totalorder %v268, %v761
        %vm794 = vcmp.eq.s32.totalorder %v268, %v762
        %vm795 = vcmp.eq.s32.totalorder %v268, %v763
        %vm796 = vcmp.eq.s32.totalorder %v268, %v764
        %vm797 = vcmp.eq.s32.totalorder %v268, %v765
        %vm798 = vcmp.eq.s32.totalorder %v268, %v766
        %vm799 = vcmp.eq.s32.totalorder %v268, %v767
        %vm800 = vcmp.eq.s32.totalorder %v268, %v768
        %vm801 = vcmp.eq.s32.totalorder %v268, %v769
        %vm802 = vcmp.eq.s32.totalorder %v268, %v770
        %vm803 = vcmp.eq.s32.totalorder %v268, %v771
        %vm804 = vcmp.eq.s32.totalorder %v268, %v772
        %vm805 = vcmp.eq.s32.totalorder %v268, %v773
        %vm806 = vcmp.eq.s32.totalorder %v268, %v774
        %vm807 = vcmp.eq.s32.totalorder %v268, %v775
        %vm808 = vcmp.eq.s32.totalorder %v268, %v776
        %vm809 = vcmp.eq.s32.totalorder %v268, %v777
        %vm810 = vcmp.eq.s32.totalorder %v268, %v778
        %vm811 = vmor %vm477, %vm779
        %vm812 = vmor %vm478, %vm780
        %vm813 = vmor %vm479, %vm781
        %vm814 = vmor %vm480, %vm782
        %vm815 = vmor %vm481, %vm783
        %vm816 = vmor %vm482, %vm784
        %vm817 = vmor %vm483, %vm785
        %vm818 = vmor %vm484, %vm786
        %vm819 = vmor %vm485, %vm787
        %vm820 = vmor %vm486, %vm788
        %vm821 = vmor %vm487, %vm789
        %vm822 = vmor %vm488, %vm790
        %vm823 = vmor %vm489, %vm791
        %vm824 = vmor %vm490, %vm792
        %vm825 = vmor %vm491, %vm793
        %vm826 = vmor %vm492, %vm794
        %vm827 = vmor %vm493, %vm795
        %vm828 = vmor %vm494, %vm796
        %vm829 = vmor %vm495, %vm797
        %vm830 = vmor %vm496, %vm798
        %vm831 = vmor %vm497, %vm799
        %vm832 = vmor %vm498, %vm800
        %vm833 = vmor %vm499, %vm801
        %vm834 = vmor %vm500, %vm802
        %vm835 = vmor %vm501, %vm803
        %vm836 = vmor %vm502, %vm804
        %vm837 = vmor %vm503, %vm805
        %vm838 = vmor %vm504, %vm806
        %vm839 = vmor %vm505, %vm807
        %vm840 = vmor %vm506, %vm808
        %vm841 = vmor %vm507, %vm809
        %vm842 = vmor %vm508, %vm810
        %v843 = vsel %vm811, 1, 0
        %v844 = vsel %vm812, 1, 0
        %v845 = vsel %vm813, 1, 0
        %v846 = vsel %vm814, 1, 0
        %v847 = vsel %vm815, 1, 0
        %v848 = vsel %vm816, 1, 0
        %v849 = vsel %vm817, 1, 0
        %v850 = vsel %vm818, 1, 0
        %v851 = vsel %vm819, 1, 0
        %v852 = vsel %vm820, 1, 0
        %v853 = vsel %vm821, 1, 0
        %v854 = vsel %vm822, 1, 0
        %v855 = vsel %vm823, 1, 0
        %v856 = vsel %vm824, 1, 0
        %v857 = vsel %vm825, 1, 0
        %v858 = vsel %vm826, 1, 0
        %v859 = vsel %vm827, 1, 0
        %v860 = vsel %vm828, 1, 0
        %v861 = vsel %vm829, 1, 0
        %v862 = vsel %vm830, 1, 0
        %v863 = vsel %vm831, 1, 0
        %v864 = vsel %vm832, 1, 0
        %v865 = vsel %vm833, 1, 0
        %v866 = vsel %vm834, 1, 0
        %v867 = vsel %vm835, 1, 0
        %v868 = vsel %vm836, 1, 0
        %v869 = vsel %vm837, 1, 0
        %v870 = vsel %vm838, 1, 0
        %v871 = vsel %vm839, 1, 0
        %v872 = vsel %vm840, 1, 0
        %v873 = vsel %vm841, 1, 0
        %v874 = vsel %vm842, 1, 0
        %v875 = vcvt.s32.f32 %v843
        %v876 = vcvt.s32.f32 %v844
        %v877 = vcvt.s32.f32 %v845
        %v878 = vcvt.s32.f32 %v846
        %v879 = vcvt.s32.f32 %v847
        %v880 = vcvt.s32.f32 %v848
        %v881 = vcvt.s32.f32 %v849
        %v882 = vcvt.s32.f32 %v850
        %v883 = vcvt.s32.f32 %v851
        %v884 = vcvt.s32.f32 %v852
        %v885 = vcvt.s32.f32 %v853
        %v886 = vcvt.s32.f32 %v854
        %v887 = vcvt.s32.f32 %v855
        %v888 = vcvt.s32.f32 %v856
        %v889 = vcvt.s32.f32 %v857
        %v890 = vcvt.s32.f32 %v858
        %v891 = vcvt.s32.f32 %v859
        %v892 = vcvt.s32.f32 %v860
        %v893 = vcvt.s32.f32 %v861
        %v894 = vcvt.s32.f32 %v862
        %v895 = vcvt.s32.f32 %v863
        %v896 = vcvt.s32.f32 %v864
        %v897 = vcvt.s32.f32 %v865
        %v898 = vcvt.s32.f32 %v866
        %v899 = vcvt.s32.f32 %v867
        %v900 = vcvt.s32.f32 %v868
        %v901 = vcvt.s32.f32 %v869
        %v902 = vcvt.s32.f32 %v870
        %v903 = vcvt.s32.f32 %v871
        %v904 = vcvt.s32.f32 %v872
        %v905 = vcvt.s32.f32 %v873
        %v906 = vcvt.s32.f32 %v874
        %v907 = vld [vmem:[#allocation2] sm:$0xff]
        %v908 = vld [vmem:[#allocation2 + $0x8] sm:$0xff]
        %v909 = vld [vmem:[#allocation2 + $0x10] sm:$0xff]
        %v910 = vld [vmem:[#allocation2 + $0x18] sm:$0xff]
        %v911 = vld [vmem:[#allocation2 + $0x20] sm:$0xff]
        %v912 = vld [vmem:[#allocation2 + $0x28] sm:$0xff]
        %v913 = vld [vmem:[#allocation2 + $0x30] sm:$0xff]
        %v914 = vld [vmem:[#allocation2 + $0x38] sm:$0xff]
        %v915 = vld [vmem:[#allocation2 + $0x40] sm:$0xff]
        %v916 = vld [vmem:[#allocation2 + $0x48] sm:$0xff]
        %v917 = vld [vmem:[#allocation2 + $0x50] sm:$0xff]
        %v918 = vld [vmem:[#allocation2 + $0x58] sm:$0xff]
        %v919 = vld [vmem:[#allocation2 + $0x60] sm:$0xff]
        %v920 = vld [vmem:[#allocation2 + $0x68] sm:$0xff]
        %v921 = vld [vmem:[#allocation2 + $0x70] sm:$0xff]
        %v922 = vld [vmem:[#allocation2 + $0x78] sm:$0xff]
        %923 = vmatpush.msra.mxu0 %v922
        %924 = vmatpush.msra.mxu0 %v921
        %925 = vmatpush.msra.mxu0 %v920
        %926 = vmatpush.msra.mxu0 %v919
        %927 = vmatpush.msra.mxu0 %v918
        %928 = vmatpush.msra.mxu0 %v917
        %929 = vmatpush.msra.mxu0 %v916
        %930 = vmatpush.msra.mxu0 %v915
        %931 = vmatpush.msra.mxu0 %v914
        %932 = vmatpush.msra.mxu0 %v913
        %933 = vmatpush.msra.mxu0 %v912
        %934 = vmatpush.msra.mxu0 %v911
        %935 = vmatpush.msra.mxu0 %v910
        %936 = vmatpush.msra.mxu0 %v909
        %937 = vmatpush.msra.mxu0 %v908
        %938 = vmatpush.msra.mxu0 %v907
        %939 = vmatmul.f32.gmra.mxu0 %v875
        %v940 = vpop.f32.mrf.mxu0
        %v941 = vadd.f32 0.0, %v940
        %942 = vmatmul.f32.gmra.mxu0 %v876
        %v943 = vpop.f32.mrf.mxu0
        %v944 = vadd.f32 0.0, %v943
        %945 = vmatmul.f32.gmra.mxu0 %v877
        %v946 = vpop.f32.mrf.mxu0
        %v947 = vadd.f32 0.0, %v946
        %948 = vmatmul.f32.gmra.mxu0 %v878
        %v949 = vpop.f32.mrf.mxu0
        %v950 = vadd.f32 0.0, %v949
        %951 = vmatmul.f32.gmra.mxu0 %v879
        %v952 = vpop.f32.mrf.mxu0
        %v953 = vadd.f32 0.0, %v952
        %954 = vmatmul.f32.gmra.mxu0 %v880
        %v955 = vpop.f32.mrf.mxu0
        %v956 = vadd.f32 0.0, %v955
        %957 = vmatmul.f32.gmra.mxu0 %v881
        %v958 = vpop.f32.mrf.mxu0
        %v959 = vadd.f32 0.0, %v958
        %960 = vmatmul.f32.gmra.mxu0 %v882
        %v961 = vpop.f32.mrf.mxu0
        %v962 = vadd.f32 0.0, %v961
        %963 = vmatmul.f32.gmra.mxu0 %v883
        %v964 = vpop.f32.mrf.mxu0
        %v965 = vadd.f32 0.0, %v964
        %966 = vmatmul.f32.gmra.mxu0 %v884
        %v967 = vpop.f32.mrf.mxu0
        %v968 = vadd.f32 0.0, %v967
        %969 = vmatmul.f32.gmra.mxu0 %v885
        %v970 = vpop.f32.mrf.mxu0
        %v971 = vadd.f32 0.0, %v970
        %972 = vmatmul.f32.gmra.mxu0 %v886
        %v973 = vpop.f32.mrf.mxu0
        %v974 = vadd.f32 0.0, %v973
        %975 = vmatmul.f32.gmra.mxu0 %v887
        %v976 = vpop.f32.mrf.mxu0
        %v977 = vadd.f32 0.0, %v976
        %978 = vmatmul.f32.gmra.mxu0 %v888
        %v979 = vpop.f32.mrf.mxu0
        %v980 = vadd.f32 0.0, %v979
        %981 = vmatmul.f32.gmra.mxu0 %v889
        %v982 = vpop.f32.mrf.mxu0
        %v983 = vadd.f32 0.0, %v982
        %984 = vmatmul.f32.gmra.mxu0 %v890
        %v985 = vpop.f32.mrf.mxu0
        %v986 = vadd.f32 0.0, %v985
        %987 = vmatmul.f32.gmra.mxu0 %v891
        %v988 = vpop.f32.mrf.mxu0
        %v989 = vadd.f32 0.0, %v988
        %990 = vmatmul.f32.gmra.mxu0 %v892
        %v991 = vpop.f32.mrf.mxu0
        %v992 = vadd.f32 0.0, %v991
        %993 = vmatmul.f32.gmra.mxu0 %v893
        %v994 = vpop.f32.mrf.mxu0
        %v995 = vadd.f32 0.0, %v994
        %996 = vmatmul.f32.gmra.mxu0 %v894
        %v997 = vpop.f32.mrf.mxu0
        %v998 = vadd.f32 0.0, %v997
        %999 = vmatmul.f32.gmra.mxu0 %v895
        %v1000 = vpop.f32.mrf.mxu0
        %v1001 = vadd.f32 0.0, %v1000
        %1002 = vmatmul.f32.gmra.mxu0 %v896
        %v1003 = vpop.f32.mrf.mxu0
        %v1004 = vadd.f32 0.0, %v1003
        %1005 = vmatmul.f32.gmra.mxu0 %v897
        %v1006 = vpop.f32.mrf.mxu0
        %v1007 = vadd.f32 0.0, %v1006
        %1008 = vmatmul.f32.gmra.mxu0 %v898
        %v1009 = vpop.f32.mrf.mxu0
        %v1010 = vadd.f32 0.0, %v1009
        %1011 = vmatmul.f32.gmra.mxu0 %v899
        %v1012 = vpop.f32.mrf.mxu0
        %v1013 = vadd.f32 0.0, %v1012
        %1014 = vmatmul.f32.gmra.mxu0 %v900
        %v1015 = vpop.f32.mrf.mxu0
        %v1016 = vadd.f32 0.0, %v1015
        %1017 = vmatmul.f32.gmra.mxu0 %v901
        %v1018 = vpop.f32.mrf.mxu0
        %v1019 = vadd.f32 0.0, %v1018
        %1020 = vmatmul.f32.gmra.mxu0 %v902
        %v1021 = vpop.f32.mrf.mxu0
        %v1022 = vadd.f32 0.0, %v1021
        %1023 = vmatmul.f32.gmra.mxu0 %v903
        %v1024 = vpop.f32.mrf.mxu0
        %v1025 = vadd.f32 0.0, %v1024
        %1026 = vmatmul.f32.gmra.mxu0 %v904
        %v1027 = vpop.f32.mrf.mxu0
        %v1028 = vadd.f32 0.0, %v1027
        %1029 = vmatmul.f32.gmra.mxu0 %v905
        %v1030 = vpop.f32.mrf.mxu0
        %v1031 = vadd.f32 0.0, %v1030
        %1032 = vmatmul.f32.gmra.mxu0 %v906
        %v1033 = vpop.f32.mrf.mxu0
        %v1034 = vadd.f32 0.0, %v1033
        %1035 = vdwg.mxu0
        %v1036 = vpack.c.bf16 %v941, %v941
        %v1037 = vpack.c.bf16 %v944, %v944
        %v1038 = vpack.c.bf16 %v947, %v947
        %v1039 = vpack.c.bf16 %v950, %v950
        %v1040 = vpack.c.bf16 %v953, %v953
        %v1041 = vpack.c.bf16 %v956, %v956
        %v1042 = vpack.c.bf16 %v959, %v959
        %v1043 = vpack.c.bf16 %v962, %v962
        %v1044 = vpack.c.bf16 %v965, %v965
        %v1045 = vpack.c.bf16 %v968, %v968
        %v1046 = vpack.c.bf16 %v971, %v971
        %v1047 = vpack.c.bf16 %v974, %v974
        %v1048 = vpack.c.bf16 %v977, %v977
        %v1049 = vpack.c.bf16 %v980, %v980
        %v1050 = vpack.c.bf16 %v983, %v983
        %v1051 = vpack.c.bf16 %v986, %v986
        %v1052 = vpack.c.bf16 %v989, %v989
        %v1053 = vpack.c.bf16 %v992, %v992
        %v1054 = vpack.c.bf16 %v995, %v995
        %v1055 = vpack.c.bf16 %v998, %v998
        %v1056 = vpack.c.bf16 %v1001, %v1001
        %v1057 = vpack.c.bf16 %v1004, %v1004
        %v1058 = vpack.c.bf16 %v1007, %v1007
        %v1059 = vpack.c.bf16 %v1010, %v1010
        %v1060 = vpack.c.bf16 %v1013, %v1013
        %v1061 = vpack.c.bf16 %v1016, %v1016
        %v1062 = vpack.c.bf16 %v1019, %v1019
        %v1063 = vpack.c.bf16 %v1022, %v1022
        %v1064 = vpack.c.bf16 %v1025, %v1025
        %v1065 = vpack.c.bf16 %v1028, %v1028
        %v1066 = vpack.c.bf16 %v1031, %v1031
        %v1067 = vpack.c.bf16 %v1034, %v1034
        %1068 = vst [vmem:[%s218] sm:$0xf] %v1036
        %1069 = vst [vmem:[%s218 + $0x4] sm:$0xf] %v1037
        %1070 = vst [vmem:[%s218 + $0x8] sm:$0xf] %v1038
        %1071 = vst [vmem:[%s218 + $0xc] sm:$0xf] %v1039
        %1072 = vst [vmem:[%s218 + $0x10] sm:$0xf] %v1040
        %1073 = vst [vmem:[%s218 + $0x14] sm:$0xf] %v1041
        %1074 = vst [vmem:[%s218 + $0x18] sm:$0xf] %v1042
        %1075 = vst [vmem:[%s218 + $0x1c] sm:$0xf] %v1043
        %1076 = vst [vmem:[%s218 + $0x20] sm:$0xf] %v1044
        %1077 = vst [vmem:[%s218 + $0x24] sm:$0xf] %v1045
        %1078 = vst [vmem:[%s218 + $0x28] sm:$0xf] %v1046
        %1079 = vst [vmem:[%s218 + $0x2c] sm:$0xf] %v1047
        %1080 = vst [vmem:[%s218 + $0x30] sm:$0xf] %v1048
        %1081 = vst [vmem:[%s218 + $0x34] sm:$0xf] %v1049
        %1082 = vst [vmem:[%s218 + $0x38] sm:$0xf] %v1050
        %1083 = vst [vmem:[%s218 + $0x3c] sm:$0xf] %v1051
        %1084 = vst [vmem:[%s218 + $0x40] sm:$0xf] %v1052
        %1085 = vst [vmem:[%s218 + $0x44] sm:$0xf] %v1053
        %1086 = vst [vmem:[%s218 + $0x48] sm:$0xf] %v1054
        %1087 = vst [vmem:[%s218 + $0x4c] sm:$0xf] %v1055
        %1088 = vst [vmem:[%s218 + $0x50] sm:$0xf] %v1056
        %1089 = vst [vmem:[%s218 + $0x54] sm:$0xf] %v1057
        %1090 = vst [vmem:[%s218 + $0x58] sm:$0xf] %v1058
        %1091 = vst [vmem:[%s218 + $0x5c] sm:$0xf] %v1059
        %1092 = vst [vmem:[%s218 + $0x60] sm:$0xf] %v1060
        %1093 = vst [vmem:[%s218 + $0x64] sm:$0xf] %v1061
        %1094 = vst [vmem:[%s218 + $0x68] sm:$0xf] %v1062
        %1095 = vst [vmem:[%s218 + $0x6c] sm:$0xf] %v1063
        %1096 = vst [vmem:[%s218 + $0x70] sm:$0xf] %v1064
        %1097 = vst [vmem:[%s218 + $0x74] sm:$0xf] %v1065
        %1098 = vst [vmem:[%s218 + $0x78] sm:$0xf] %v1066
        %1099 = vst [vmem:[%s218 + $0x7c] sm:$0xf] %v1067
        %s1100 = sand.u32 %s115, 1
        %s1101 = scalar_lea.sflag [#allocation4], %s1100
        %s1102 = sand.u32 %s115, 1
        %s1103 = smul.addr %s1102, 128
        %s1104 = scalar_lea.vmem [#allocation5], %s1103
        // Predicated region
        $region37: #{tpu_custom_call.1} parent=31 // pred_check
          %p1105 = pneg %p125
        $region38: #{tpu_custom_call.1} parent=31 // pred_check_branch
          %1107 = sbr.rel (%p1105) target = $region40
        $region39: #{tpu_custom_call.1} parent=31 // pred_region
          %s1108 = smul.u32 32, %s23
          %1110 = vsyncadd %s1101, 0
          %s1111 = smul.addr %s22, 32
          %s1112 = sadd.s32 %s1108, %s1111
          %s1113 = smul.addr %s1112, 4
          %s1114 = scalar_lea.hbm %s3, %s1113
          %s1115 = sshll.u32 %s1104, 4
          %s1116 = int_to_ptr.vmem [resolvable:$true] %s1115
          %s1117 = sshll.u32 %s1114, 4
          %s1118 = int_to_ptr.hbm [resolvable:$true] %s1117
          %1123 = dma.vmem_to_hbm [thread:$0]  %s1116, 2048, %s1118, %s1101, 64, 64, 4
        $region40: #{tpu_custom_call.1} parent=31 // pred_fallthru
          _
      $region32: #{tpu_custom_call.1} parent=5 // pred_fallthru
        _
      %p1124 = scmp.le.s32.totalorder 2, %s13
      // Predicated region
      $region41: #{tpu_custom_call.1} parent=5 // pred_check
        %p1125 = pneg %p1124
      $region42: #{tpu_custom_call.1} parent=5 // pred_check_branch
        %1127 = sbr.rel (%p1125) target = $region44
      $region43: #{tpu_custom_call.1} parent=5 // pred_region
        %s1128 = ssub.s32 %s13, 2
        // Predicated region
        $region45: #{tpu_custom_call.1} parent=43 // pred_check
          %p1129 = pneg %p131
        $region46: #{tpu_custom_call.1} parent=43 // pred_check_branch
          %1131 = sbr.rel (%p1129) target = $region48
        $region47: #{tpu_custom_call.1} parent=43 // pred_region
          %s1132 = sand.u32 %s116, 1
          %s1133 = scalar_lea.sflag [#allocation4], %s1132
          %s1134 = sand.u32 %s116, 1
          %s1135 = smul.addr %s1134, 128
          %s1136 = scalar_lea.vmem [#allocation5], %s1135
          %1138 = dma.done %s1133, 2048
        $region48: #{tpu_custom_call.1} parent=43 // pred_fallthru
          _
      $region44: #{tpu_custom_call.1} parent=5 // pred_fallthru
        _
    $region6: #{tpu_custom_call.1} parent=1 // loop_footer
      %s17 = sadd.s32 1, %s13
    $region7: #{tpu_custom_call.1} parent=1 // loop_footer_branch
      %12 = sbr.rel target = $region3
    $region8: #{tpu_custom_call.1} parent=1 // loop_exit
      _
    %1139 = vsyncpa [#allocation3], 1
    %s1140 = scalar_lea.sflag [#allocation3], 1
    %1141 = vsyncpa %s1140, 1
    %1142 = vsyncpa [#allocation4], 1
    %s1143 = scalar_lea.sflag [#allocation4], 1
    %1144 = vsyncpa %s1143, 1

</llo_original>
